<compile_context>
chip_gen: v5e
topology: v5e:2x2
jax: 0.10.0
libtpu: 0.0.40
codegen_flags: <defaults>
</compile_context>

<pallas_src>
import functools

import numpy as np
import jax
import jax.numpy as jnp
from jax import lax
from jax.experimental import pallas as pl
from jax.experimental.pallas import tpu as pltpu


def _round_up(n, m):
    return ((n + m - 1) // m) * m


def _cdiv(a, b):
    return -(-a // b)


def _forward_dft_matrix(T, Tp, n_k, fk, dtype):
    """Lane-padded, per-tile-interleaved real rfft matrix (trace-time constant).

    Wfwd tile k = [Cf_k | Sf_k] of shape (Tp, 2*fk) with Cf = cos(ang)/sqrt(T),
    Sf = -sin(ang)/sqrt(T).  Padded time rows / frequency columns are exactly zero.
    The inverse transform reuses this matrix: Winv = diag(alpha) @ Wfwd^T.
    """
    F = T // 2 + 1
    Fpad = n_k * fk
    t = np.arange(T, dtype=np.float64)[:, None]
    f = np.arange(F, dtype=np.float64)[None, :]
    ang = 2.0 * np.pi * t * f / T
    scale = 1.0 / np.sqrt(T)
    Cf = np.zeros((Tp, Fpad), np.float64)
    Sf = np.zeros((Tp, Fpad), np.float64)
    Cf[:T, :F] = np.cos(ang) * scale
    Sf[:T, :F] = -np.sin(ang) * scale
    Wfwd = np.concatenate(
        [Cf.reshape(Tp, n_k, fk), Sf.reshape(Tp, n_k, fk)], axis=2
    ).reshape(Tp, n_k * 2 * fk)
    return jnp.asarray(Wfwd, dtype=dtype)


def _fold_weights(weight_complex, T, n_k, fk, store_dtype, replicate):
    """(C, F, 2) complex weight -> real/imag multipliers of shape (Cw, n_k*fk).

    The ortho-irfft Hermitian weights alpha (1 at DC / Nyquist, 2 elsewhere) are folded
    in so the inverse matmul can reuse the *forward* DFT matrix transposed.  Padded
    frequency columns are zero.  `replicate` > 1 only when the channel count is not
    sublane aligned (fallback path); otherwise the kernel broadcasts over batches.
    """
    C, F, _ = weight_complex.shape
    Fpad = n_k * fk
    alpha = np.full((F,), 2.0, np.float32)
    alpha[0] = 1.0
    if T % 2 == 0:
        alpha[-1] = 1.0
    alpha = jnp.asarray(alpha)
    wr = weight_complex[..., 0].astype(jnp.float32) * alpha
    wi = weight_complex[..., 1].astype(jnp.float32) * alpha
    pad = ((0, 0), (0, Fpad - F))
    wr = jnp.pad(wr, pad)
    wi = jnp.pad(wi, pad)
    if replicate > 1:
        wr = jnp.tile(wr, (replicate, 1))
        wi = jnp.tile(wi, (replicate, 1))
    return wr.astype(store_dtype), wi.astype(store_dtype)


def _choose_block_b(B, C, row_align, per_block_bytes, budget, prefer_large,
                    target_rows=512):
    """Batches packed into the matmul M dim per grid step.

    Prefers >= 2 (even) steps on the parallel b axis (keeps both v7x TensorCores busy)
    and bounds the per-block VMEM footprint.  Falls back to the *smallest* legal block
    (never the whole batch) when nothing fits the budget.
    """
    divisors = [d for d in range(1, B + 1) if B % d == 0]
    legal = [d for d in divisors if (d * C) % row_align == 0 or d == B]
    if not legal:
        legal = [B]
    fits = [d for d in legal if per_block_bytes(d) <= budget]
    if not fits:
        return legal[0]                       # graceful degradation, smallest legal block

    def rank(d):
        n_b = B // d
        multi = n_b >= 2
        even = multi and (n_b % 2 == 0)
        size = d * C if prefer_large else min(d * C, target_rows)
        return (multi, even, size)

    return max(fits, key=rank)


def _sgf_kernel(x_ref, wfwd_ref, wr_ref, wi_ref, o_ref, *acc,
                fk, n_k, block_b, compute_dtype):
    # Forward rfft for this frequency tile: xc = [Xr_k | Xi_k], f32 MXU accumulation.
    xc = jnp.dot(x_ref[...], wfwd_ref[...], preferred_element_type=jnp.float32)
    xr = xc[:, :fk]                           # fk is a multiple of 128 -> aligned slices
    xi = xc[:, fk:]

    # Complex pointwise multiply (f32 on the VPU).  wr/wi carry the per-(channel, freq)
    # weight with the irfft Hermitian factors pre-folded; when they arrive compact
    # (C rows) they are broadcast over the block_b packed batches in-kernel.
    wr = wr_ref[...].astype(jnp.float32)
    wi = wi_ref[...].astype(jnp.float32)
    if wr.shape[0] != xr.shape[0]:
        wr = jnp.tile(wr, (block_b, 1))
        wi = jnp.tile(wi, (block_b, 1))
    yr = xr * wr - xi * wi
    yi = xi * wr + xr * wi
    yc = jnp.concatenate([yr, yi], axis=1).astype(compute_dtype)

    # Inverse DFT reuses the forward matrix transposed (Winv = diag(alpha) @ Wfwd^T,
    # alpha already folded into wr/wi): contract both operands over the frequency axis.
    part = lax.dot_general(yc, wfwd_ref[...],
                           dimension_numbers=(((1,), (1,)), ((), ())),
                           preferred_element_type=jnp.float32)

    if n_k == 1:
        # Single frequency tile: direct dense store, no accumulator, no pl.when.
        o_ref[...] = part.astype(o_ref.dtype)
        return

    # k is the ('arbitrary') reduction axis; the output block index is constant over it,
    # so o_ref is resident and can be accumulated into directly when it is f32.  A f32
    # VMEM scratch is only allocated when the output dtype cannot hold the accumulation.
    acc_ref = acc[0] if acc else o_ref
    k = pl.program_id(1)

    @pl.when(k == 0)
    def _():
        acc_ref[...] = part.astype(acc_ref.dtype)

    @pl.when(k > 0)
    def _():
        acc_ref[...] = acc_ref[...] + part.astype(acc_ref.dtype)

    if acc:
        @pl.when(k == n_k - 1)
        def _():
            o_ref[...] = acc_ref[...].astype(o_ref.dtype)


def sparse_gf_forward(x, weight_complex, *, use_bf16=True, block_b=None, max_fk=None):
    """SparseGF.forward: irfft(rfft(x, dim=-1, 'ortho') * complex_weight, n=T, 'ortho').

    x: (B, C, T) real; weight_complex: (C, T//2+1, 2).
    use_bf16=True (default) feeds the two DFT matmuls with bf16 operands (f32 MXU
    accumulation, f32 complex multiply); use_bf16=False keeps full f32 matmul inputs.
    """
    B, C, T = x.shape
    F = T // 2 + 1
    assert weight_complex.shape == (C, F, 2), weight_complex.shape

    compute_dtype = jnp.bfloat16 if use_bf16 else jnp.float32
    c_item = jnp.dtype(compute_dtype).itemsize
    out_dtype = x.dtype
    out_item = jnp.dtype(out_dtype).itemsize
    out_is_f32 = jnp.dtype(out_dtype) == jnp.dtype(jnp.float32)

    # ---- generation-aware VMEM budget (v7x: 64 MiB per TC vs 128 MiB on v5e/v6e) ----
    try:
        vmem_cap = int(pltpu.get_tpu_info().vmem_capacity_bytes)
    except Exception:  # pragma: no cover - conservative default if query unavailable
        vmem_cap = 128 << 20
    budget = int(0.45 * vmem_cap)             # resident working set target, with headroom

    # ---- time axis padded to a lane multiple: dense stores + fully packed MXU ----
    Tp = _round_up(max(T, 128), 128)

    # ---- frequency tiling: pad F to 128 lanes; split so the double-buffered
    #      (Tp, 2*fk) DFT tile stays inside its share of the budget ----
    Fpad_min = _round_up(F, 128)
    per128 = Tp * 2 * 128 * c_item * 2        # bytes for 128 freqs of Wfwd, 2 buffers
    fk_cap = max(1, int(0.4 * budget) // per128) * 128
    fk_cap = max(128, min(fk_cap, Fpad_min))
    if max_fk is not None:
        fk_cap = max(128, min(fk_cap, _round_up(max_fk, 128)))
    n_k = _cdiv(Fpad_min, fk_cap)
    fk = _round_up(_cdiv(Fpad_min, n_k), 128)
    Fpad = n_k * fk
    wfwd_bytes = Tp * 2 * fk * c_item * 2     # double-buffered forward DFT tile

    # ---- batch packing into the matmul M dim ----
    row_align = max(8, 32 // c_item)          # sublane granularity (8 f32 / 16 bf16)
    compact_c = (C % 8 == 0)                  # weights broadcastable in-kernel
    use_scratch = (n_k > 1) and not out_is_f32

    def per_block_bytes(d):
        m = d * C
        cw = C if (compact_c or d == 1) else m
        return (m * Tp * c_item * 2               # x block (double buffered)
                + m * Tp * out_item * 2           # out block (double buffered)
                + (m * Tp * 4 if use_scratch else 0)   # f32 accumulator scratch
                + 2 * cw * fk * c_item * 2        # wr / wi blocks
                + m * 2 * fk * 4 * 4              # xc / yr / yi / yc f32 temporaries
                + m * Tp * 4)                     # inverse-matmul f32 result

    if block_b is None:
        block_b = _choose_block_b(B, C, row_align, per_block_bytes,
                                  max(budget - wfwd_bytes, 0),
                                  prefer_large=(n_k > 1))
    assert B % block_b == 0, (B, block_b)
    M = block_b * C
    n_b = B // block_b

    # ---- operands ----
    wfwd = _forward_dft_matrix(T, Tp, n_k, fk, compute_dtype)
    replicate = 1 if (compact_c or block_b == 1) else block_b
    wr, wi = _fold_weights(weight_complex, T, n_k, fk, compute_dtype, replicate)
    Cw = wr.shape[0]

    x2d = x.reshape(B * C, T)                 # free row-major view
    if Tp != T:
        x2d = jnp.pad(x2d, ((0, 0), (0, Tp - T)))
    x2d = x2d.astype(compute_dtype)

    kernel = functools.partial(_sgf_kernel, fk=fk, n_k=n_k, block_b=block_b,
                               compute_dtype=compute_dtype)

    # ---- scoped VMEM limit: actual resident estimate (2 buffers everywhere), clamped ----
    est = wfwd_bytes + per_block_bytes(block_b)
    vmem_limit = int(min(max(32 << 20, est * 1.35 + (2 << 20)), 0.9 * vmem_cap))

    # Advisory cost so XLA schedules the surrounding pad/cast/slice correctly.
    dft_streams = 1 if n_k == 1 else n_b      # invariant blocks are only re-fetched when
                                              # their (k) block index changes
    cost = pl.CostEstimate(
        flops=int(8 * B * C * Tp * Fpad),     # forward + inverse DFT matmuls
        transcendentals=0,
        bytes_accessed=int(B * C * Tp * (c_item + out_item)
                           + Tp * 2 * Fpad * c_item * dft_streams
                           + 2 * Cw * Fpad * c_item * dft_streams))

    out2d = pl.pallas_call(
        kernel,
        out_shape=jax.ShapeDtypeStruct((B * C, Tp), out_dtype),
        grid_spec=pltpu.PrefetchScalarGridSpec(
            num_scalar_prefetch=0,
            grid=(n_b, n_k),                  # reduction axis (k) last
            in_specs=[
                pl.BlockSpec((M, Tp), lambda b, k: (b, 0)),        # x rows
                pl.BlockSpec((Tp, 2 * fk), lambda b, k: (0, k)),   # fused [cos|-sin] tile
                pl.BlockSpec((Cw, fk), lambda b, k: (0, k)),       # real weight * alpha
                pl.BlockSpec((Cw, fk), lambda b, k: (0, k)),       # imag weight * alpha
            ],
            out_specs=pl.BlockSpec((M, Tp), lambda b, k: (b, 0)),
            scratch_shapes=([pltpu.VMEM((M, Tp), jnp.float32)] if use_scratch else []),
        ),
        compiler_params=pltpu.CompilerParams(
            dimension_semantics=("parallel", "arbitrary"),
            vmem_limit_bytes=vmem_limit),
        cost_estimate=cost,
    )(x2d, wfwd, wr, wi)

    out = out2d[:, :T] if Tp != T else out2d
    return out.reshape(B, C, T)


def _reference(x, weight):
    """NumPy float64 reference: irfft(rfft(x, ortho) * complex_weight, n=T, ortho)."""
    xn = np.asarray(x, dtype=np.float64)
    wn = np.asarray(weight, dtype=np.float64)
    wc = wn[..., 0] + 1j * wn[..., 1]                          # (C, F)
    Xf = np.fft.rfft(xn, axis=-1, norm="ortho")                # (B, C, F)
    return np.fft.irfft(Xf * wc[None], n=x.shape[-1], axis=-1, norm="ortho")


if __name__ == "__main__":
    key = jax.random.PRNGKey(0)
    k1, k2, k3, k4 = jax.random.split(key, 4)

    # ---- case 1: module-like shape (dim=4 channels, T=16), default bf16 MXU path ----
    B, C, T = 8, 4, 16
    F = T // 2 + 1
    x = jax.random.normal(k1, (B, C, T), dtype=jnp.float32)
    # Deterministic stand-in for trunc_normal_(std=0.02) init of complex_weight.
    w = jax.random.normal(k2, (C, F, 2), dtype=jnp.float32) * 0.02

    y = jax.block_until_ready(sparse_gf_forward(x, w))
    np.testing.assert_allclose(np.asarray(y), _reference(x, w), rtol=6e-2, atol=3e-3)

    # ---- case 2: f32 path, forced frequency tiling (n_k > 1) and non-128 T (padding) ----
    B2, C2, T2 = 4, 8, 288
    F2 = T2 // 2 + 1
    x2 = jax.random.normal(k3, (B2, C2, T2), dtype=jnp.float32)
    w2 = jax.random.normal(k4, (C2, F2, 2), dtype=jnp.float32) * 0.02

    y2 = jax.block_until_ready(sparse_gf_forward(x2, w2, use_bf16=False, max_fk=128))
    np.testing.assert_allclose(np.asarray(y2), _reference(x2, w2), rtol=2e-3, atol=1e-4)

    # ---- case 3: default bf16 path with compact (C-row) weights broadcast in-kernel ----
    y3 = jax.block_until_ready(sparse_gf_forward(x2, w2))
    np.testing.assert_allclose(np.asarray(y3), _reference(x2, w2), rtol=6e-2, atol=3e-3)

    print("KERNEL_OK")
</pallas_src>

<mosaic_0001>
module attributes {stable_mosaic.version = 11 : i64} {
  func.func @_sgf_kernel(%arg0: i32, %arg1: i32, %arg2: memref<16x128xbf16, #tpu.memory_space<vmem>>, %arg3: memref<128x256xbf16, #tpu.memory_space<vmem>>, %arg4: memref<16x128xbf16, #tpu.memory_space<vmem>>, %arg5: memref<16x128xbf16, #tpu.memory_space<vmem>>, %arg6: memref<16x128xf32, #tpu.memory_space<vmem>>) attributes {dimension_semantics = [#tpu.dimension_semantics<parallel>, #tpu.dimension_semantics<arbitrary>], iteration_bounds = array<i64: 2, 1>, scalar_prefetch = 0 : i64, scratch_operands = 0 : i64, tpu.core_type = #tpu.core_type<tc>, window_params = [{transform_indices = @transform_0, window_bounds = array<i64: 16, 128>}, {transform_indices = @transform_1, window_bounds = array<i64: 128, 256>}, {transform_indices = @transform_2, window_bounds = array<i64: 16, 128>}, {transform_indices = @transform_3, window_bounds = array<i64: 16, 128>}, {transform_indices = @transform_4, window_bounds = array<i64: 16, 128>}]} {
    %c0 = arith.constant 0 : index
    %c0_0 = arith.constant 0 : index
    %0 = vector.load %arg2[%c0, %c0_0] : memref<16x128xbf16, #tpu.memory_space<vmem>>, vector<16x128xbf16>
    %c0_1 = arith.constant 0 : index
    %c0_2 = arith.constant 0 : index
    %1 = vector.load %arg3[%c0_1, %c0_2] : memref<128x256xbf16, #tpu.memory_space<vmem>>, vector<128x256xbf16>
    %cst = arith.constant dense<0.000000e+00> : vector<16x256xf32>
    %2 = tpu.matmul %0, %1, %cst {dimension_numbers = #tpu.dot_dimension_numbers<[1], [0], [0], [1], [0, 0, 1, 1], [], []>} : vector<16x128xbf16>, vector<128x256xbf16>, vector<16x256xf32> -> vector<16x256xf32>
    %3 = vector.extract_strided_slice %2 {offsets = [0, 0], sizes = [16, 128], strides = [1, 1]} : vector<16x256xf32> to vector<16x128xf32>
    %4 = vector.extract_strided_slice %2 {offsets = [0, 128], sizes = [16, 128], strides = [1, 1]} : vector<16x256xf32> to vector<16x128xf32>
    %c0_3 = arith.constant 0 : index
    %c0_4 = arith.constant 0 : index
    %5 = vector.load %arg4[%c0_3, %c0_4] : memref<16x128xbf16, #tpu.memory_space<vmem>>, vector<16x128xbf16>
    %6 = arith.extf %5 : vector<16x128xbf16> to vector<16x128xf32>
    %c0_5 = arith.constant 0 : index
    %c0_6 = arith.constant 0 : index
    %7 = vector.load %arg5[%c0_5, %c0_6] : memref<16x128xbf16, #tpu.memory_space<vmem>>, vector<16x128xbf16>
    %8 = arith.extf %7 : vector<16x128xbf16> to vector<16x128xf32>
    %9 = arith.mulf %3, %6 : vector<16x128xf32>
    %10 = arith.mulf %4, %8 : vector<16x128xf32>
    %11 = arith.subf %9, %10 : vector<16x128xf32>
    %12 = arith.mulf %4, %6 : vector<16x128xf32>
    %13 = arith.mulf %3, %8 : vector<16x128xf32>
    %14 = arith.addf %12, %13 : vector<16x128xf32>
    %15 = tpu.concatenate %11, %14 in 1 : vector<16x128xf32>, vector<16x128xf32> -> vector<16x256xf32>
    %16 = arith.truncf %15 : vector<16x256xf32> to vector<16x256xbf16>
    %c0_7 = arith.constant 0 : index
    %c0_8 = arith.constant 0 : index
    %17 = vector.load %arg3[%c0_7, %c0_8] : memref<128x256xbf16, #tpu.memory_space<vmem>>, vector<128x256xbf16>
    %cst_9 = arith.constant dense<0.000000e+00> : vector<16x128xf32>
    %18 = tpu.matmul %16, %17, %cst_9 {dimension_numbers = #tpu.dot_dimension_numbers<[1], [1], [0], [0], [0, 0, 1, 0], [], []>} : vector<16x256xbf16>, vector<128x256xbf16>, vector<16x128xf32> -> vector<16x128xf32>
    %c0_10 = arith.constant 0 : index
    %c0_11 = arith.constant 0 : index
    %19 = vector.load %arg6[%c0_10, %c0_11] : memref<16x128xf32, #tpu.memory_space<vmem>>, vector<16x128xf32>
    tpu.vector_store %arg6[%c0_10, %c0_11], %18 {strides = array<i32>} : memref<16x128xf32, #tpu.memory_space<vmem>>, vector<16x128xf32>,
    return
  }
  func.func @transform_0(%arg0: i32, %arg1: i32) -> (i32, i32) {
    %c0_i32 = arith.constant 0 : i32
    %c0_i32_0 = arith.constant 0 : i32
    return %arg0, %c0_i32 : i32, i32
  }
  func.func @transform_1(%arg0: i32, %arg1: i32) -> (i32, i32) {
    %c0_i32 = arith.constant 0 : i32
    %c0_i32_0 = arith.constant 0 : i32
    return %c0_i32, %arg1 : i32, i32
  }
  func.func @transform_2(%arg0: i32, %arg1: i32) -> (i32, i32) {
    %c0_i32 = arith.constant 0 : i32
    %c0_i32_0 = arith.constant 0 : i32
    return %c0_i32, %arg1 : i32, i32
  }
  func.func @transform_3(%arg0: i32, %arg1: i32) -> (i32, i32) {
    %c0_i32 = arith.constant 0 : i32
    %c0_i32_0 = arith.constant 0 : i32
    return %c0_i32, %arg1 : i32, i32
  }
  func.func @transform_4(%arg0: i32, %arg1: i32) -> (i32, i32) {
    %c0_i32 = arith.constant 0 : i32
    %c0_i32_0 = arith.constant 0 : i32
    return %arg0, %c0_i32 : i32, i32
  }
}

</mosaic_0001>

<llo_original>
// kernel: tpu_custom_call.1
$region0: #{tpu_custom_call.1}
  #allocation0 [shape = 'u32[]', space=smem, size = 0x4, offset = 0x4, fixed_abs, tag = 'smem constant byte address 0x4 - core index']
  #allocation1 [shape = 'u32[72,128]{1,0:T(1,128)}', space=vmem, size = 0x9000, scoped, tag = 'internal scratch']
  %s0 = inlined_call_operand.hbm [shape: bf16[32,128], index: 0, kind: input, shape index: {}]
  %s1 = inlined_call_operand.hbm [shape: bf16[128,256], index: 1, kind: input, shape index: {}]
  %s2 = inlined_call_operand.hbm [shape: bf16[16,128], index: 2, kind: input, shape index: {}]
  %s3 = inlined_call_operand.hbm [shape: bf16[16,128], index: 3, kind: input, shape index: {}]
  %s4 = inlined_call_operand.hbm [shape: f32[32,128], index: 4, kind: output, shape index: {}]
  %s5 = sld [smem:[#allocation0]]
  $region65: #{tpu_custom_call.1} parent=0
    _
  %s7 = ssub.s32 1, %s5
  %s8 = scalar_select 0, %s7, %s5
  $region1: #{tpu_custom_call.1} parent=0
    #allocation2 [shape = 'u8[8192]{0}', space=vmem, size = 0x2000, scoped, tag = 'input window, operand 0']
    #allocation3 [shape = 's32[2]{0}', space=sflag, size = 0x8, scoped, tag = 'scoped memory for tpu_custom_call.1']
    #allocation4 [shape = 's32[2]{0}', space=sflag, size = 0x8, scoped, tag = 'scoped memory for tpu_custom_call.1']
    #allocation5 [shape = 'u8[65536]{0}', space=vmem, size = 0x10000, scoped, tag = 'input window, operand 1, single buffered']
    #allocation6 [shape = 's32[1]{0}', space=sflag, size = 0x4, scoped, tag = 'scoped memory for tpu_custom_call.1']
    #allocation7 [shape = 'u8[4096]{0}', space=vmem, size = 0x1000, scoped, tag = 'input window, operand 2, single buffered']
    #allocation8 [shape = 'u8[4096]{0}', space=vmem, size = 0x1000, scoped, tag = 'input window, operand 3, single buffered']
    #allocation9 [shape = 's32[1]{0}', space=sflag, size = 0x4, scoped, tag = 'scoped memory for tpu_custom_call.1']
    #allocation10 [shape = 'u8[16384]{0}', space=vmem, size = 0x4000, scoped, tag = 'output window, operand 0']
    %9 = vsyncpa [#allocation3], 0
    %s10 = scalar_lea.sflag [#allocation3], 1
    %11 = vsyncpa %s10, 0
    %12 = vsyncpa [#allocation6], 0
    %13 = vsyncpa [#allocation9], 0
    %14 = vsyncpa [#allocation4], 0
    %s15 = scalar_lea.sflag [#allocation4], 1
    %16 = vsyncpa %s15, 0
    loop: start=0, step=1, limit=4
    $region2: #{tpu_custom_call.1} parent=1 // loop_pre_header
      _
    $region3: #{tpu_custom_call.1} parent=1 // loop_header
      %s18 = sphi 0, %s22
      %p19 = scmp.ge.s32.totalorder %s18, 4
      %s25 = sphi 0, %s37
      %s26 = sphi 0, %s33
      %s27 = sphi 0, %s25
      %s28 = sphi 0, %s26
      %s29 = sphi 0, %s27
      %s30 = sphi 0, %s28
      %s40 = sphi 0, %s42
      %s43 = sphi 0, %s40
      %s44 = sphi 0, %s43
      %s60 = sphi 0, %s44
      %s66 = sphi 0, %s68
      %s69 = sphi 0, %s66
      %s70 = sphi 0, %s69
      %s86 = sphi 0, %s70
      %s92 = sphi 0, %s94
      %s95 = sphi 0, %s92
      %s96 = sphi 0, %s95
      %s112 = sphi 0, %s96
      %s118 = sphi 0, %s120
      %s121 = sphi 0, %s118
      %s122 = sphi 0, %s121
      %s138 = sphi 0, %s122
      %s144 = sphi 0, %s146
      %s147 = sphi 0, %s144
      %s148 = sphi 0, %s147
      %s164 = sphi 0, %s148
    $region4: #{tpu_custom_call.1} parent=1 // loop_header_branch
      %21 = sbr.rel (%p19) target = $region8
    $region5: #{tpu_custom_call.1} parent=1 // loop_body
      %s23 = ssub.s32 %s18, 1
      %s24 = ssub.s32 %s18, 2
      %s31 = sadd.s32 1, %s26
      %p32 = scmp.ge.s32.totalorder %s31, 1
      %s33 = scalar_select %p32, 0, %s31
      %s34 = sadd.s32 1, %s25
      %s35 = scalar_select %p32, %s34, %s25
      %p36 = scmp.ge.s32.totalorder %s35, 2
      %s37 = scalar_select %p36, 0, %s35
      %s38 = ssub.s32 %s25, %s37
      %p39 = scmp.eq.s32.totalorder %s38, 0
      %s41 = sadd.s32 %s40, 1
      %s42 = scalar_select %p39, %s40, %s41
      %p45 = pneg %p39
      %p46 = scmp.eq.s32.totalorder %s18, 1
      %p47 = por %p45, %p46
      %p48 = scmp.ne.s32.totalorder %s40, %s43
      %p49 = scmp.eq.s32.totalorder %s18, 0
      %p50 = por %p48, %p49
      %p51 = scmp.ne.s32.totalorder %s40, %s43
      %p52 = scmp.eq.s32.totalorder %s23, 1
      %p53 = por %p51, %p52
      %p54 = scmp.ne.s32.totalorder %s43, %s44
      %p55 = scmp.eq.s32.totalorder %s23, 0
      %p56 = por %p54, %p55
      %p57 = scmp.ne.s32.totalorder %s43, %s44
      %p58 = scmp.eq.s32.totalorder %s24, 1
      %p59 = por %p57, %p58
      %p61 = scmp.ne.s32.totalorder %s44, %s60
      %p62 = scmp.eq.s32.totalorder %s24, 0
      %p63 = por %p61, %p62
      %s64 = ssub.s32 %s26, %s33
      %p65 = scmp.eq.s32.totalorder %s64, 0
      %s67 = sadd.s32 %s66, 1
      %s68 = scalar_select %p65, %s66, %s67
      %p71 = pneg %p65
      %p72 = scmp.eq.s32.totalorder %s18, 1
      %p73 = por %p71, %p72
      %p74 = scmp.ne.s32.totalorder %s66, %s69
      %p75 = scmp.eq.s32.totalorder %s18, 0
      %p76 = por %p74, %p75
      %p77 = scmp.ne.s32.totalorder %s66, %s69
      %p78 = scmp.eq.s32.totalorder %s23, 1
      %p79 = por %p77, %p78
      %p80 = scmp.ne.s32.totalorder %s69, %s70
      %p81 = scmp.eq.s32.totalorder %s23, 0
      %p82 = por %p80, %p81
      %p83 = scmp.ne.s32.totalorder %s69, %s70
      %p84 = scmp.eq.s32.totalorder %s24, 1
      %p85 = por %p83, %p84
      %p87 = scmp.ne.s32.totalorder %s70, %s86
      %p88 = scmp.eq.s32.totalorder %s24, 0
      %p89 = por %p87, %p88
      %s90 = ssub.s32 %s26, %s33
      %p91 = scmp.eq.s32.totalorder %s90, 0
      %s93 = sadd.s32 %s92, 1
      %s94 = scalar_select %p91, %s92, %s93
      %p97 = pneg %p91
      %p98 = scmp.eq.s32.totalorder %s18, 1
      %p99 = por %p97, %p98
      %p100 = scmp.ne.s32.totalorder %s92, %s95
      %p101 = scmp.eq.s32.totalorder %s18, 0
      %p102 = por %p100, %p101
      %p103 = scmp.ne.s32.totalorder %s92, %s95
      %p104 = scmp.eq.s32.totalorder %s23, 1
      %p105 = por %p103, %p104
      %p106 = scmp.ne.s32.totalorder %s95, %s96
      %p107 = scmp.eq.s32.totalorder %s23, 0
      %p108 = por %p106, %p107
      %p109 = scmp.ne.s32.totalorder %s95, %s96
      %p110 = scmp.eq.s32.totalorder %s24, 1
      %p111 = por %p109, %p110
      %p113 = scmp.ne.s32.totalorder %s96, %s112
      %p114 = scmp.eq.s32.totalorder %s24, 0
      %p115 = por %p113, %p114
      %s116 = ssub.s32 %s26, %s33
      %p117 = scmp.eq.s32.totalorder %s116, 0
      %s119 = sadd.s32 %s118, 1
      %s120 = scalar_select %p117, %s118, %s119
      %p123 = pneg %p117
      %p124 = scmp.eq.s32.totalorder %s18, 1
      %p125 = por %p123, %p124
      %p126 = scmp.ne.s32.totalorder %s118, %s121
      %p127 = scmp.eq.s32.totalorder %s18, 0
      %p128 = por %p126, %p127
      %p129 = scmp.ne.s32.totalorder %s118, %s121
      %p130 = scmp.eq.s32.totalorder %s23, 1
      %p131 = por %p129, %p130
      %p132 = scmp.ne.s32.totalorder %s121, %s122
      %p133 = scmp.eq.s32.totalorder %s23, 0
      %p134 = por %p132, %p133
      %p135 = scmp.ne.s32.totalorder %s121, %s122
      %p136 = scmp.eq.s32.totalorder %s24, 1
      %p137 = por %p135, %p136
      %p139 = scmp.ne.s32.totalorder %s122, %s138
      %p140 = scmp.eq.s32.totalorder %s24, 0
      %p141 = por %p139, %p140
      %s142 = ssub.s32 %s25, %s37
      %p143 = scmp.eq.s32.totalorder %s142, 0
      %s145 = sadd.s32 %s144, 1
      %s146 = scalar_select %p143, %s144, %s145
      %p149 = pneg %p143
      %p150 = scmp.eq.s32.totalorder %s18, 1
      %p151 = por %p149, %p150
      %p152 = scmp.ne.s32.totalorder %s144, %s147
      %p153 = scmp.eq.s32.totalorder %s18, 0
      %p154 = por %p152, %p153
      %p155 = scmp.ne.s32.totalorder %s144, %s147
      %p156 = scmp.eq.s32.totalorder %s23, 1
      %p157 = por %p155, %p156
      %p158 = scmp.ne.s32.totalorder %s147, %s148
      %p159 = scmp.eq.s32.totalorder %s23, 0
      %p160 = por %p158, %p159
      %p161 = scmp.ne.s32.totalorder %s147, %s148
      %p162 = scmp.eq.s32.totalorder %s24, 1
      %p163 = por %p161, %p162
      %p165 = scmp.ne.s32.totalorder %s148, %s164
      %p166 = scmp.eq.s32.totalorder %s24, 0
      %p167 = por %p165, %p166
      %p168 = scmp.le.s32.totalorder 1, %s18
      %p169 = scmp.lt.s32.totalorder %s18, 3
      %p170 = pnand %p168, %p169
      %p171 = pneg %p170
      // Predicated region
      $region9: #{tpu_custom_call.1} parent=5 // pred_check
        _
      $region10: #{tpu_custom_call.1} parent=5 // pred_check_branch
        %173 = sbr.rel (%p170) target = $region12
      $region11: #{tpu_custom_call.1} parent=5 // pred_region
        %s174 = ssub.s32 %s18, 1
        // Predicated region
        $region13: #{tpu_custom_call.1} parent=11 // pred_check
          %p175 = pneg %p82
        $region14: #{tpu_custom_call.1} parent=11 // pred_check_branch
          %177 = sbr.rel (%p175) target = $region16
        $region15: #{tpu_custom_call.1} parent=11 // pred_region
          %s178 = smul.u32 2, %s28
          %180 = vsyncadd [#allocation6], 0
          %s181 = smul.addr %s178, 4
          %s182 = scalar_lea.hbm %s1, %s181
          %s183 = sshll.u32 %s182, 4
          %s184 = int_to_ptr.hbm [resolvable:$true] %s183
          %s185 = sshll.u32 [#allocation5], 4
          %s186 = int_to_ptr.vmem [resolvable:$true] %s185
          %191 = dma.hbm_to_vmem [thread:$0]  %s184, 2048, %s186, [#allocation6], 128, 128, 8
        $region16: #{tpu_custom_call.1} parent=11 // pred_fallthru
          _
        // Predicated region
        $region17: #{tpu_custom_call.1} parent=11 // pred_check
          %p192 = pneg %p108
        $region18: #{tpu_custom_call.1} parent=11 // pred_check_branch
          %194 = sbr.rel (%p192) target = $region20
        $region19: #{tpu_custom_call.1} parent=11 // pred_region
          %196 = vsyncadd [#allocation6], 0
          %s197 = smul.addr %s28, 4
          %s198 = scalar_lea.hbm %s2, %s197
          %s199 = sshll.u32 %s198, 4
          %s200 = int_to_ptr.hbm [resolvable:$true] %s199
          %s201 = sshll.u32 [#allocation7], 4
          %s202 = int_to_ptr.vmem [resolvable:$true] %s201
          %207 = dma.hbm_to_vmem [thread:$0]  %s200, 128, %s202, [#allocation6], 64, 64, 4
        $region20: #{tpu_custom_call.1} parent=11 // pred_fallthru
          _
        // Predicated region
        $region21: #{tpu_custom_call.1} parent=11 // pred_check
          %p208 = pneg %p134
        $region22: #{tpu_custom_call.1} parent=11 // pred_check_branch
          %210 = sbr.rel (%p208) target = $region24
        $region23: #{tpu_custom_call.1} parent=11 // pred_region
          %212 = vsyncadd [#allocation9], 0
          %s213 = smul.addr %s28, 4
          %s214 = scalar_lea.hbm %s3, %s213
          %s215 = sshll.u32 %s214, 4
          %s216 = int_to_ptr.hbm [resolvable:$true] %s215
          %s217 = sshll.u32 [#allocation8], 4
          %s218 = int_to_ptr.vmem [resolvable:$true] %s217
          %223 = dma.hbm_to_vmem [thread:$0]  %s216, 128, %s218, [#allocation9], 64, 64, 4
        $region24: #{tpu_custom_call.1} parent=11 // pred_fallthru
          _
      $region12: #{tpu_custom_call.1} parent=5 // pred_fallthru
        _
      %p224 = scmp.lt.s32.totalorder %s18, 2
      // Predicated region
      $region25: #{tpu_custom_call.1} parent=5 // pred_check
        %p225 = pneg %p224
      $region26: #{tpu_custom_call.1} parent=5 // pred_check_branch
        %227 = sbr.rel (%p225) target = $region28
      $region27: #{tpu_custom_call.1} parent=5 // pred_region
        // Predicated region
        $region29: #{tpu_custom_call.1} parent=27 // pred_check
          %p228 = pneg %p50
        $region30: #{tpu_custom_call.1} parent=27 // pred_check_branch
          %230 = sbr.rel (%p228) target = $region32
        $region31: #{tpu_custom_call.1} parent=27 // pred_region
          %s231 = sand.u32 %s40, 1
          %s232 = scalar_lea.sflag [#allocation3], %s231
          %s233 = sand.u32 %s40, 1
          %s234 = smul.addr %s233, 8
          %s235 = scalar_lea.vmem [#allocation2], %s234
          %s236 = smul.u32 2, %s25
          %238 = vsyncadd %s232, 0
          %s239 = smul.addr %s236, 4
          %s240 = scalar_lea.hbm %s0, %s239
          %s241 = sshll.u32 %s240, 4
          %s242 = int_to_ptr.hbm [resolvable:$true] %s241
          %s243 = sshll.u32 %s235, 4
          %s244 = int_to_ptr.vmem [resolvable:$true] %s243
          %249 = dma.hbm_to_vmem [thread:$0]  %s242, 128, %s244, %s232, 64, 64, 4
        $region32: #{tpu_custom_call.1} parent=27 // pred_fallthru
          _
      $region28: #{tpu_custom_call.1} parent=5 // pred_fallthru
        _
      %p250 = scmp.le.s32.totalorder 1, %s18
      %p251 = scmp.lt.s32.totalorder %s18, 3
      %p252 = pnand %p250, %p251
      %p253 = pneg %p252
      // Predicated region
      $region33: #{tpu_custom_call.1} parent=5 // pred_check
        _
      $region34: #{tpu_custom_call.1} parent=5 // pred_check_branch
        %255 = sbr.rel (%p252) target = $region36
      $region35: #{tpu_custom_call.1} parent=5 // pred_region
        %s256 = ssub.s32 %s18, 1
        %s257 = sand.u32 %s43, 1
        %s258 = scalar_lea.sflag [#allocation3], %s257
        %s259 = sand.u32 %s43, 1
        %s260 = smul.addr %s259, 8
        %s261 = scalar_lea.vmem [#allocation2], %s260
        // Predicated region
        $region37: #{tpu_custom_call.1} parent=35 // pred_check
          %p262 = pneg %p56
        $region38: #{tpu_custom_call.1} parent=35 // pred_check_branch
          %264 = sbr.rel (%p262) target = $region40
        $region39: #{tpu_custom_call.1} parent=35 // pred_region
          %266 = dma.done %s258, 128
        $region40: #{tpu_custom_call.1} parent=35 // pred_fallthru
          _
        // Predicated region
        $region41: #{tpu_custom_call.1} parent=35 // pred_check
          %p267 = pneg %p82
        $region42: #{tpu_custom_call.1} parent=35 // pred_check_branch
          %269 = sbr.rel (%p267) target = $region44
        $region43: #{tpu_custom_call.1} parent=35 // pred_region
          %271 = dma.done [#allocation6], 2048
        $region44: #{tpu_custom_call.1} parent=35 // pred_fallthru
          _
        // Predicated region
        $region45: #{tpu_custom_call.1} parent=35 // pred_check
          %p272 = pneg %p108
        $region46: #{tpu_custom_call.1} parent=35 // pred_check_branch
          %274 = sbr.rel (%p272) target = $region48
        $region47: #{tpu_custom_call.1} parent=35 // pred_region
          %276 = dma.done [#allocation6], 128
        $region48: #{tpu_custom_call.1} parent=35 // pred_fallthru
          _
        // Predicated region
        $region49: #{tpu_custom_call.1} parent=35 // pred_check
          %p277 = pneg %p134
        $region50: #{tpu_custom_call.1} parent=35 // pred_check_branch
          %279 = sbr.rel (%p277) target = $region52
        $region51: #{tpu_custom_call.1} parent=35 // pred_region
          %281 = dma.done [#allocation9], 128
        $region52: #{tpu_custom_call.1} parent=35 // pred_fallthru
          _
        %s282 = sand.u32 %s43, 1
        %s283 = scalar_lea.sflag [#allocation3], %s282
        %s284 = sand.u32 %s43, 1
        %s285 = smul.addr %s284, 8
        %s286 = scalar_lea.vmem [#allocation2], %s285
        %p287 = pneg %p56
        %p288 = pneg %p53
        %p289 = pneg %p82
        %p290 = pneg %p79
        %p291 = pneg %p108
        %p292 = pneg %p105
        %p293 = pneg %p134
        %p294 = pneg %p131
        %p295 = pneg %p160
        %p296 = pneg %p157
        %s297 = sand.u32 %s147, 1
        %s298 = scalar_lea.sflag [#allocation4], %s297
        %s299 = sand.u32 %s147, 1
        %s300 = smul.addr %s299, 16
        %s301 = scalar_lea.vmem [#allocation10], %s300
        %s302 = smul.u32 2, %s27
        %s303 = smul.u32 2, %s28
        %s304 = smul.u32 2, %s27
        %v305 = vld [vmem:[%s261] sm:$0xf]
        %v306 = vld [vmem:[%s261 + $0x4] sm:$0xf]
        %v307 = vld [vmem:[#allocation5] sm:$0xff]
        %v308 = vld [vmem:[#allocation5 + $0x8] sm:$0xff]
        %v309 = vld [vmem:[#allocation5 + $0x10] sm:$0xff]
        %v310 = vld [vmem:[#allocation5 + $0x18] sm:$0xff]
        %v311 = vld [vmem:[#allocation5 + $0x20] sm:$0xff]
        %v312 = vld [vmem:[#allocation5 + $0x28] sm:$0xff]
        %v313 = vld [vmem:[#allocation5 + $0x30] sm:$0xff]
        %v314 = vld [vmem:[#allocation5 + $0x38] sm:$0xff]
        %v315 = vld [vmem:[#allocation5 + $0x40] sm:$0xff]
        %v316 = vld [vmem:[#allocation5 + $0x48] sm:$0xff]
        %v317 = vld [vmem:[#allocation5 + $0x50] sm:$0xff]
        %v318 = vld [vmem:[#allocation5 + $0x58] sm:$0xff]
        %v319 = vld [vmem:[#allocation5 + $0x60] sm:$0xff]
        %v320 = vld [vmem:[#allocation5 + $0x68] sm:$0xff]
        %v321 = vld [vmem:[#allocation5 + $0x70] sm:$0xff]
        %v322 = vld [vmem:[#allocation5 + $0x78] sm:$0xff]
        %v325 = vunpack.c.l.b16 %v305
        %v326 = vunpack.c.l.b16 %v306
        %v327 = vpack.c.b16 %v326, %v325
        %v345 = vunpack.c.l.b16 %v307
        %v346 = vunpack.c.h.b16 %v307
        %v347 = vunpack.c.l.b16 %v308
        %v348 = vunpack.c.h.b16 %v308
        %v349 = vunpack.c.l.b16 %v309
        %v350 = vunpack.c.h.b16 %v309
        %v351 = vunpack.c.l.b16 %v310
        %v352 = vunpack.c.h.b16 %v310
        %v353 = vunpack.c.l.b16 %v311
        %v354 = vunpack.c.h.b16 %v311
        %v355 = vunpack.c.l.b16 %v312
        %v356 = vunpack.c.h.b16 %v312
        %v357 = vunpack.c.l.b16 %v313
        %v358 = vunpack.c.h.b16 %v313
        %v359 = vunpack.c.l.b16 %v314
        %v360 = vunpack.c.h.b16 %v314
        %v361 = vunpack.c.l.b16 %v315
        %v362 = vunpack.c.h.b16 %v315
        %v363 = vunpack.c.l.b16 %v316
        %v364 = vunpack.c.h.b16 %v316
        %v365 = vunpack.c.l.b16 %v317
        %v366 = vunpack.c.h.b16 %v317
        %v367 = vunpack.c.l.b16 %v318
        %v368 = vunpack.c.h.b16 %v318
        %v369 = vunpack.c.l.b16 %v319
        %v370 = vunpack.c.h.b16 %v319
        %v371 = vunpack.c.l.b16 %v320
        %v372 = vunpack.c.h.b16 %v320
        %v373 = vunpack.c.l.b16 %v321
        %v374 = vunpack.c.h.b16 %v321
        %v375 = vunpack.c.l.b16 %v322
        %v376 = vunpack.c.h.b16 %v322
        %v377 = vpack.c.b16 %v347, %v345
        %v378 = vpack.c.b16 %v348, %v346
        %v379 = vpack.c.b16 %v351, %v349
        %v380 = vpack.c.b16 %v352, %v350
        %v381 = vpack.c.b16 %v355, %v353
        %v382 = vpack.c.b16 %v356, %v354
        %v383 = vpack.c.b16 %v359, %v357
        %v384 = vpack.c.b16 %v360, %v358
        %v385 = vpack.c.b16 %v363, %v361
        %v386 = vpack.c.b16 %v364, %v362
        %v387 = vpack.c.b16 %v367, %v365
        %v388 = vpack.c.b16 %v368, %v366
        %v389 = vpack.c.b16 %v371, %v369
        %v390 = vpack.c.b16 %v372, %v370
        %v391 = vpack.c.b16 %v375, %v373
        %v392 = vpack.c.b16 %v376, %v374
        %409 = vmatpush.bf16.msra.mxu0 %v391
        %410 = vmatpush.bf16.msra.mxu0 %v389
        %411 = vmatpush.bf16.msra.mxu0 %v387
        %412 = vmatpush.bf16.msra.mxu0 %v385
        %413 = vmatpush.bf16.msra.mxu0 %v383
        %414 = vmatpush.bf16.msra.mxu0 %v381
        %415 = vmatpush.bf16.msra.mxu0 %v379
        %416 = vmatpush.bf16.msra.mxu0 %v377
        %417 = vmatmul.bf16.gmra.mxu0 %v327
        %v418 = vpop.f32.mrf.mxu0
        %v419 = vadd.f32 0.0, %v418
        %v420 = vpop.f32.mrf.mxu0
        %v421 = vadd.f32 0.0, %v420
        %422 = vdwg.mxu0
        %423 = vmatpush.bf16.msra.mxu0 %v392
        %424 = vmatpush.bf16.msra.mxu0 %v390
        %425 = vmatpush.bf16.msra.mxu0 %v388
        %426 = vmatpush.bf16.msra.mxu0 %v386
        %427 = vmatpush.bf16.msra.mxu0 %v384
        %428 = vmatpush.bf16.msra.mxu0 %v382
        %429 = vmatpush.bf16.msra.mxu0 %v380
        %430 = vmatpush.bf16.msra.mxu0 %v378
        %431 = vmatmul.bf16.gmra.mxu0 %v327
        %v432 = vpop.f32.mrf.mxu0
        %v433 = vadd.f32 0.0, %v432
        %v434 = vpop.f32.mrf.mxu0
        %v435 = vadd.f32 0.0, %v434
        %436 = vdwg.mxu0
        %v437 = vld [vmem:[#allocation7] sm:$0xf]
        %v438 = vld [vmem:[#allocation7 + $0x4] sm:$0xf]
        %v439 = vunpack.c.l.bf16 %v437
        %v440 = vunpack.c.l.bf16 %v438
        %v441 = vld [vmem:[#allocation8] sm:$0xf]
        %v442 = vld [vmem:[#allocation8 + $0x4] sm:$0xf]
        %v443 = vunpack.c.l.bf16 %v441
        %v444 = vunpack.c.l.bf16 %v442
        %v445 = vmul.f32 %v419, %v439
        %v446 = vmul.f32 %v421, %v440
        %v447 = vmul.f32 %v433, %v443
        %v448 = vmul.f32 %v435, %v444
        %v449 = vsub.f32 %v445, %v447
        %v450 = vsub.f32 %v446, %v448
        %v451 = vmul.f32 %v433, %v439
        %v452 = vmul.f32 %v435, %v440
        %v453 = vmul.f32 %v419, %v443
        %v454 = vmul.f32 %v421, %v444
        %v455 = vadd.f32 %v451, %v453
        %v456 = vadd.f32 %v452, %v454
        %v457 = vpack.c.bf16 %v450, %v449
        %v458 = vpack.c.bf16 %v456, %v455
        %459 = vmatpush.bf16.xpose.msra.mxu0 %v391
        %460 = vmatpush.bf16.xpose.msra.mxu0 %v389
        %461 = vmatpush.bf16.xpose.msra.mxu0 %v387
        %462 = vmatpush.bf16.xpose.msra.mxu0 %v385
        %463 = vmatpush.bf16.xpose.msra.mxu0 %v383
        %464 = vmatpush.bf16.xpose.msra.mxu0 %v381
        %465 = vmatpush.bf16.xpose.msra.mxu0 %v379
        %466 = vmatpush.bf16.xpose.msra.mxu0 %v377
        %467 = vmatmul.bf16.gmra.mxu0 %v457
        %v468 = vpop.f32.mrf.mxu0
        %v469 = vadd.f32 0.0, %v468
        %v470 = vpop.f32.mrf.mxu0
        %v471 = vadd.f32 0.0, %v470
        %472 = vdwg.mxu0
        %473 = vmatpush.bf16.xpose.msra.mxu0 %v392
        %474 = vmatpush.bf16.xpose.msra.mxu0 %v390
        %475 = vmatpush.bf16.xpose.msra.mxu0 %v388
        %476 = vmatpush.bf16.xpose.msra.mxu0 %v386
        %477 = vmatpush.bf16.xpose.msra.mxu0 %v384
        %478 = vmatpush.bf16.xpose.msra.mxu0 %v382
        %479 = vmatpush.bf16.xpose.msra.mxu0 %v380
        %480 = vmatpush.bf16.xpose.msra.mxu0 %v378
        %481 = vmatmul.bf16.gmra.mxu0 %v458
        %v482 = vpop.f32.mrf.mxu0
        %v483 = vadd.f32 %v469, %v482
        %v484 = vpop.f32.mrf.mxu0
        %v485 = vadd.f32 %v471, %v484
        %486 = vdwg.mxu0
        %487 = vst [vmem:[%s301] sm:$0xff] %v483
        %488 = vst [vmem:[%s301 + $0x8] sm:$0xff] %v485
        %s489 = sand.u32 %s147, 1
        %s490 = scalar_lea.sflag [#allocation4], %s489
        %s491 = sand.u32 %s147, 1
        %s492 = smul.addr %s491, 16
        %s493 = scalar_lea.vmem [#allocation10], %s492
        // Predicated region
        $region53: #{tpu_custom_call.1} parent=35 // pred_check
          %p494 = pneg %p157
        $region54: #{tpu_custom_call.1} parent=35 // pred_check_branch
          %496 = sbr.rel (%p494) target = $region56
        $region55: #{tpu_custom_call.1} parent=35 // pred_region
          %s497 = smul.u32 2, %s27
          %499 = vsyncadd %s490, 0
          %s500 = smul.addr %s497, 8
          %s501 = scalar_lea.hbm %s4, %s500
          %s502 = sshll.u32 %s493, 4
          %s503 = int_to_ptr.vmem [resolvable:$true] %s502
          %s504 = sshll.u32 %s501, 4
          %s505 = int_to_ptr.hbm [resolvable:$true] %s504
          %510 = dma.vmem_to_hbm [thread:$0]  %s503, 256, %s505, %s490, 128, 128, 8
        $region56: #{tpu_custom_call.1} parent=35 // pred_fallthru
          _
      $region36: #{tpu_custom_call.1} parent=5 // pred_fallthru
        _
      %p511 = scmp.le.s32.totalorder 2, %s18
      // Predicated region
      $region57: #{tpu_custom_call.1} parent=5 // pred_check
        %p512 = pneg %p511
      $region58: #{tpu_custom_call.1} parent=5 // pred_check_branch
        %514 = sbr.rel (%p512) target = $region60
      $region59: #{tpu_custom_call.1} parent=5 // pred_region
        %s515 = ssub.s32 %s18, 2
        // Predicated region
        $region61: #{tpu_custom_call.1} parent=59 // pred_check
          %p516 = pneg %p163
        $region62: #{tpu_custom_call.1} parent=59 // pred_check_branch
          %518 = sbr.rel (%p516) target = $region64
        $region63: #{tpu_custom_call.1} parent=59 // pred_region
          %s519 = sand.u32 %s148, 1
          %s520 = scalar_lea.sflag [#allocation4], %s519
          %s521 = sand.u32 %s148, 1
          %s522 = smul.addr %s521, 16
          %s523 = scalar_lea.vmem [#allocation10], %s522
          %525 = dma.done %s520, 256
        $region64: #{tpu_custom_call.1} parent=59 // pred_fallthru
          _
      $region60: #{tpu_custom_call.1} parent=5 // pred_fallthru
        _
    $region6: #{tpu_custom_call.1} parent=1 // loop_footer
      %s22 = sadd.s32 1, %s18
    $region7: #{tpu_custom_call.1} parent=1 // loop_footer_branch
      %17 = sbr.rel target = $region3
    $region8: #{tpu_custom_call.1} parent=1 // loop_exit
      _
    %526 = vsyncpa [#allocation3], 1
    %s527 = scalar_lea.sflag [#allocation3], 1
    %528 = vsyncpa %s527, 1
    %529 = vsyncpa [#allocation6], 1
    %530 = vsyncpa [#allocation9], 1
    %531 = vsyncpa [#allocation4], 1
    %s532 = scalar_lea.sflag [#allocation4], 1
    %533 = vsyncpa %s532, 1

</llo_original>
